<compile_context>
chip_gen: v7x
topology: tpu7x:2x2x1
jax: 0.10.0
libtpu: 0.0.40
codegen_flags: <defaults>
</compile_context>

<pallas_src>
import functools

import jax
import jax.numpy as jnp
from jax import lax
from jax.experimental import pallas as pl
from jax.experimental.pallas import tpu as pltpu


_TARGET_TILE_BYTES = 2 << 20  # ~2 MiB per input tile per pipeline buffer.


# --------------------------------------------------------------------------- #
# Shared in-kernel helper: value / velocity / acceleration squared sums.       #
# --------------------------------------------------------------------------- #
def _temporal_sq_sums(e):
    """Per-column sums of e^2, v^2, a^2 for a (N, W) float32 block.

    v / a are the first / second temporal differences along axis 0, computed
    with XLU sublane rolls (a = first difference of v).  The wrap-around rows
    introduced by the rolls are removed by subtracting their contributions,
    which are identical whichever direction pltpu.roll shifts, so the result
    does not depend on the roll convention and needs no per-element row mask.
    """
    n = e.shape[0]
    d = pltpu.roll(e, shift=1, axis=0) - e            # +-first difference, 1 wrap row
    a = pltpu.roll(d, shift=1, axis=0) - d            # +-second difference, 2 wrap rows
    e0, e1 = e[0:1, :], e[1:2, :]                     # single-row slices (cheap)
    em2, em1 = e[n - 2:n - 1, :], e[n - 1:n, :]
    w = e0 - em1                                      # wrap row of d (up to sign)
    g1 = e1 + em1 - 2.0 * e0                          # wrap rows of a (up to sign)
    g2 = e0 + em2 - 2.0 * em1
    s0 = jnp.sum(e * e, axis=0, keepdims=True)
    s1 = jnp.sum(d * d, axis=0, keepdims=True) - w * w
    s2 = jnp.sum(a * a, axis=0, keepdims=True) - g1 * g1 - g2 * g2
    return jnp.concatenate([s0, s1, s2], axis=0)      # (3, W): one stacked store


# --------------------------------------------------------------------------- #
# Streaming kernel for the (large) vertices slab.                              #
# --------------------------------------------------------------------------- #
def _sq_diff_kernel(rec_ref, tar_ref, out_ref, *, d_total, tile_d, need_mask):
    # rec_ref / tar_ref: (1, N, tile_d) block; the full frame axis is resident
    # so temporal differences never cross a block boundary.
    e = rec_ref[0].astype(jnp.float32) - tar_ref[0].astype(jnp.float32)
    if need_mask:                                     # static: only if padding exists
        dj = pl.program_id(1)
        lane = lax.broadcasted_iota(jnp.int32, e.shape, 1)
        e = jnp.where(lane < d_total - dj * tile_d, e, 0.0)
    out_ref[0] = _temporal_sq_sums(e)                 # (3, tile_d), written once


def _pick_tile_d(n_frames, d, itemsize, target_bytes):
    # A block dim equal to the full array dim is always layout-legal, so use a
    # full-D block (no padding, no ragged-tail mask) whenever it fits budget.
    if d <= 128 or n_frames * d * itemsize <= target_bytes:
        return int(d)
    tile = max(128, ((target_bytes // (n_frames * itemsize)) // 128) * 128)
    return int(d) if tile >= d else int(tile)


def fused_sq_diff_sums(rec, tar, *, target_tile_bytes=_TARGET_TILE_BYTES):
    """Single streaming HBM pass over rec/tar of shape (B, N, D).

    With e = rec - tar, returns scalar sums
      s0 = sum(e^2)
      s1 = sum((e[:,1:] - e[:,:-1])^2)
      s2 = sum((e[:,2:] + e[:,:-2] - 2 e[:,1:-1])^2)
    so each MSE term of the loss is s_k divided by its exact element count.
    """
    assert rec.shape == tar.shape and rec.ndim == 3
    B, N, D = map(int, rec.shape)
    assert N >= 3, "FaceLoss needs >= 3 frames for the acceleration term"
    itemsize = jnp.dtype(rec.dtype).itemsize
    tile_d = _pick_tile_d(N, D, itemsize, target_tile_bytes)
    n_dt = pl.cdiv(D, tile_d)
    d_pad = n_dt * tile_d

    # TODO(synk): for very long sequences (N * 128 * itemsize > budget, e.g.
    # v7x's 64 MiB VMEM) tile the frame axis with a 2-frame halo; for tiny
    # N*D group several batches per block.  Typical face data hits neither.
    vmem_bytes = 2 * (2 * N * tile_d * itemsize) + 2 * 3 * tile_d * 4
    vmem_limit = int(min(max(vmem_bytes * 5 // 4 + (1 << 20), 16 << 20), 64 << 20))

    kernel = functools.partial(
        _sq_diff_kernel,
        d_total=D, tile_d=tile_d,                     # Python ints only
        need_mask=bool(D % tile_d != 0),
    )
    partials = pl.pallas_call(
        kernel,
        out_shape=jax.ShapeDtypeStruct((B, 3, d_pad), jnp.float32),
        grid_spec=pltpu.PrefetchScalarGridSpec(
            num_scalar_prefetch=0,
            grid=(B, n_dt),
            in_specs=[
                pl.BlockSpec((1, N, tile_d), lambda b, dj: (b, 0, dj)),
                pl.BlockSpec((1, N, tile_d), lambda b, dj: (b, 0, dj)),
            ],
            out_specs=pl.BlockSpec((1, 3, tile_d), lambda b, dj: (b, 0, dj)),
        ),
        compiler_params=pltpu.CompilerParams(
            # No cross-step state: both axes truly parallel (v7x megacore).
            dimension_semantics=("parallel", "parallel"),
            vmem_limit_bytes=vmem_limit,
        ),
        cost_estimate=pl.CostEstimate(
            flops=12 * B * N * D,
            transcendentals=0,
            bytes_accessed=2 * B * N * D * itemsize + B * 3 * d_pad * 4,
        ),
    )(rec, tar)

    sums = jnp.sum(partials, axis=(0, 2))             # tiny tree-sum in XLA
    return sums[0], sums[1], sums[2]


# --------------------------------------------------------------------------- #
# Fused face kernel: geodesic cos + rotation/expression partial sums.          #
# --------------------------------------------------------------------------- #
def _face_kernel(rc_ref, tc_ref, cos_ref, sums_ref):
    rc = rc_ref[0].astype(jnp.float32)                # (N, 9 + D_exp): [R | exps]
    tc = tc_ref[0].astype(jnp.float32)
    # Geodesic cos: trace(R1 @ R2^T) == elementwise sum over the 9 rotation lanes.
    lane = lax.broadcasted_iota(jnp.int32, rc.shape, 1)
    tr = jnp.sum(jnp.where(lane < 9, rc * tc, 0.0), axis=1, keepdims=True)   # (N, 1)
    cos_ref[0] = jnp.clip((tr - 1.0) * 0.5, -1.0 + 1e-6, 1.0 - 1e-6)
    # Value / velocity / acceleration partial sums for rotation + expression lanes.
    sums_ref[0] = _temporal_sq_sums(rc - tc)


def face_rotation_expression_terms(rec_cat, tar_cat):
    """One launch for the whole (tiny) face slab.  Inputs: (B, N, 9 + D_exp)."""
    B, N, W = map(int, rec_cat.shape)
    assert N >= 3
    return pl.pallas_call(
        _face_kernel,
        out_shape=(jax.ShapeDtypeStruct((B, N, 1), jnp.float32),
                   jax.ShapeDtypeStruct((B, 3, W), jnp.float32)),
        grid_spec=pltpu.PrefetchScalarGridSpec(
            num_scalar_prefetch=0,
            grid=(B,),
            in_specs=[pl.BlockSpec((1, N, W), lambda b: (b, 0, 0)),
                      pl.BlockSpec((1, N, W), lambda b: (b, 0, 0))],
            out_specs=[pl.BlockSpec((1, N, 1), lambda b: (b, 0, 0)),
                       pl.BlockSpec((1, 3, W), lambda b: (b, 0, 0))],
        ),
        compiler_params=pltpu.CompilerParams(
            dimension_semantics=("parallel",)),
    )(rec_cat, tar_cat)


# --------------------------------------------------------------------------- #
# Small JAX prep (tiny tensors) + the full FaceLoss forward.                   #
# --------------------------------------------------------------------------- #
def rotation_6d_to_matrix(d6):
    """Zhou et al. 6D representation -> 3x3 rotation (rows b1, b2, b3)."""
    a1, a2 = d6[..., :3], d6[..., 3:6]
    b1 = a1 / jnp.maximum(jnp.linalg.norm(a1, axis=-1, keepdims=True), 1e-12)
    b2 = a2 - jnp.sum(b1 * a2, axis=-1, keepdims=True) * b1
    b2 = b2 / jnp.maximum(jnp.linalg.norm(b2, axis=-1, keepdims=True), 1e-12)
    b3 = jnp.cross(b1, b2)
    return jnp.stack([b1, b2, b3], axis=-2)


def face_loss(rec_face, tar_face, tar_betas, tar_trans, Loss_6D,
              vertices_rec, vertices_tar):
    """Pallas-backed FaceLoss.forward (Loss_6D=False path)."""
    if Loss_6D:
        # TODO(synk): the Loss_6D=True branch of the reference reads
        # rec_pose/tar_pose before assignment (dead/broken upstream).
        raise NotImplementedError("FaceLoss forward is only defined for Loss_6D=False")
    del tar_betas, tar_trans                          # unused by the reference forward

    bs = int(tar_face.shape[0])
    n = int(min(tar_face.shape[1], rec_face.shape[1]))
    j = 1
    de = int(rec_face.shape[2]) - 6 * j

    # 6D -> rotation matrix stays in XLA: the pose slab is a few KB of HBM
    # traffic and the conversion (normalize / Gram-Schmidt / cross) is
    # lane-sparse on TPU.  TODO(synk): fuse into _face_kernel if ever needed.
    r_rec = rotation_6d_to_matrix(rec_face[:, :n, :6 * j]).reshape(bs, n, 9)
    r_tar = rotation_6d_to_matrix(tar_face[:, :n, :6 * j]).reshape(bs, n, 9)

    # One fused launch for rotation (geodesic + vel + acc) and expressions
    # (value + vel + acc): concatenate into a single lane axis [R(9) | exps].
    rec_cat = jnp.concatenate(
        [r_rec.astype(jnp.float32), rec_face[:, :n, 6 * j:].astype(jnp.float32)], axis=-1)
    tar_cat = jnp.concatenate(
        [r_tar.astype(jnp.float32), tar_face[:, :n, 6 * j:].astype(jnp.float32)], axis=-1)
    cos, face_sums = face_rotation_expression_terms(rec_cat, tar_cat)

    loss_rec = jnp.mean(jnp.arccos(cos))              # acos on tiny (bs, n) slab in XLA
    tot = jnp.sum(face_sums, axis=0)                  # (3, 9 + de)
    rot = jnp.sum(tot[:, :9], axis=-1)
    exps = jnp.sum(tot[:, 9:], axis=-1)
    velocity_loss = rot[1] / float(bs * (n - 1) * 9)
    acceleration_loss = rot[2] / float(bs * (n - 2) * 9)
    loss_face = exps[0] / float(bs * n * de)
    face_velocity_loss = exps[1] / float(bs * (n - 1) * de)
    face_acceleration_loss = exps[2] / float(bs * (n - 2) * de)

    # Mesh vertices (bulk of HBM traffic): flatten trailing dims into a
    # lane-dense (B, frames, feat) slab; temporal diffs are along axis 1 so the
    # flatten changes none of the three MSE terms.
    vr = vertices_rec["vertices"]
    vt = vertices_tar["vertices"]
    vr3 = vr.reshape(vr.shape[0], vr.shape[1], -1)
    vt3 = vt.reshape(vt.shape[0], vt.shape[1], -1)
    bv, nv, dv = map(int, vr3.shape)
    s0v, s1v, s2v = fused_sq_diff_sums(vr3, vt3)
    vectices_loss = s0v / float(bv * nv * dv)
    vert_velocity_loss = s1v / float(bv * (nv - 1) * dv)
    vert_acceleration_loss = s2v / float(bv * (nv - 2) * dv)

    return (loss_rec + velocity_loss + acceleration_loss
            + loss_face + face_velocity_loss + face_acceleration_loss
            + vectices_loss + vert_velocity_loss + vert_acceleration_loss)


# --------------------------------------------------------------------------- #
# Pure-JAX reference (mirrors the PyTorch module) for the self-check.          #
# --------------------------------------------------------------------------- #
def _reference_face_loss(rec_face, tar_face, vertices_rec, vertices_tar):
    bs = rec_face.shape[0]
    n = min(tar_face.shape[1], rec_face.shape[1])
    rec_pose = rotation_6d_to_matrix(rec_face[:, :n, :6].reshape(bs, n, 1, 6))
    tar_pose = rotation_6d_to_matrix(tar_face[:, :n, :6].reshape(bs, n, 1, 6))

    m1 = rec_pose.reshape(-1, 3, 3)
    m2 = tar_pose.reshape(-1, 3, 3)
    m = jnp.matmul(m1, jnp.swapaxes(m2, 1, 2))
    cos = (m[:, 0, 0] + m[:, 1, 1] + m[:, 2, 2] - 1.0) / 2.0
    cos = jnp.clip(cos, -1.0 + 1e-6, 1.0 - 1e-6)
    loss_rec = jnp.mean(jnp.arccos(cos))

    mse = lambda a, b: jnp.mean((a - b) ** 2)
    vel = lambda a, b: mse(a[:, 1:] - a[:, :-1], b[:, 1:] - b[:, :-1])
    acc = lambda a, b: mse(a[:, 2:] + a[:, :-2] - 2 * a[:, 1:-1],
                           b[:, 2:] + b[:, :-2] - 2 * b[:, 1:-1])

    velocity_loss = vel(rec_pose, tar_pose)
    acceleration_loss = acc(rec_pose, tar_pose)
    rec_exps, tar_exps = rec_face[:, :, 6:], tar_face[:, :, 6:]
    loss_face = mse(rec_exps, tar_exps)
    face_velocity_loss = vel(rec_exps, tar_exps)
    face_acceleration_loss = acc(rec_exps, tar_exps)
    vr, vt = vertices_rec["vertices"], vertices_tar["vertices"]
    vectices_loss = mse(vr, vt)
    vert_velocity_loss = vel(vr, vt)
    vert_acceleration_loss = acc(vr, vt)
    return (loss_rec + velocity_loss + acceleration_loss
            + loss_face + face_velocity_loss + face_acceleration_loss
            + vectices_loss + vert_velocity_loss + vert_acceleration_loss)


if __name__ == "__main__":
    key = jax.random.PRNGKey(0)
    k = jax.random.split(key, 6)

    bs, n = 2, 8
    face_dim = 6 + 58                 # 6D jaw rotation + 58 expression coeffs
    n_verts = 150                     # => vertex feature dim 450

    rec_face = jax.random.normal(k[0], (bs, n, face_dim), jnp.float32)
    tar_face = jax.random.normal(k[1], (bs, n, face_dim), jnp.float32)
    tar_betas = jax.random.normal(k[2], (bs, 300), jnp.float32)   # unused by forward
    tar_trans = jax.random.normal(k[3], (bs, n, 3), jnp.float32)  # unused by forward
    vertices_rec = {"vertices": jax.random.normal(k[4], (bs, n, n_verts, 3), jnp.float32)}
    vertices_tar = {"vertices": jax.random.normal(k[5], (bs, n, n_verts, 3), jnp.float32)}

    loss_fn = jax.jit(face_loss, static_argnums=(4,))
    loss = loss_fn(rec_face, tar_face, tar_betas, tar_trans, False,
                   vertices_rec, vertices_tar)
    loss = jax.block_until_ready(loss)

    ref = jax.block_until_ready(
        _reference_face_loss(rec_face, tar_face, vertices_rec, vertices_tar))

    assert jnp.isfinite(loss), loss
    assert jnp.allclose(loss, ref, rtol=1e-4, atol=1e-4), (loss, ref)

    # Also exercise the D-tiled + masked-ragged-tail path of the vertex kernel
    # (the main config takes the full-D no-mask fast path).
    vr3 = vertices_rec["vertices"].reshape(bs, n, -1)
    vt3 = vertices_tar["vertices"].reshape(bs, n, -1)
    s_full = fused_sq_diff_sums(vr3, vt3)
    s_tiled = fused_sq_diff_sums(vr3, vt3, target_tile_bytes=4096)
    for a, b in zip(jax.block_until_ready(s_tiled), jax.block_until_ready(s_full)):
        assert jnp.allclose(a, b, rtol=1e-4, atol=1e-4), (a, b)

    print("KERNEL_OK")
</pallas_src>

<mosaic_0001>
module attributes {stable_mosaic.version = 11 : i64} {
  func.func @_face_kernel(%arg0: i32, %arg1: memref<1x8x67xf32, #tpu.memory_space<vmem>>, %arg2: memref<1x8x67xf32, #tpu.memory_space<vmem>>, %arg3: memref<1x8x1xf32, #tpu.memory_space<vmem>>, %arg4: memref<1x3x67xf32, #tpu.memory_space<vmem>>) attributes {dimension_semantics = [#tpu.dimension_semantics<parallel>], iteration_bounds = array<i64: 2>, scalar_prefetch = 0 : i64, scratch_operands = 0 : i64, tpu.core_type = #tpu.core_type<tc>, window_params = [{transform_indices = @transform_0, window_bounds = array<i64: 1, 8, 67>}, {transform_indices = @transform_1, window_bounds = array<i64: 1, 8, 67>}, {transform_indices = @transform_2, window_bounds = array<i64: 1, 8, 1>}, {transform_indices = @transform_3, window_bounds = array<i64: 1, 3, 67>}]} {
    %c0 = arith.constant 0 : index
    %c0_0 = arith.constant 0 : index
    %c0_1 = arith.constant 0 : index
    %0 = vector.load %arg1[%c0, %c0_0, %c0_1] : memref<1x8x67xf32, #tpu.memory_space<vmem>>, vector<1x8x67xf32>
    %1 = vector.shape_cast %0 : vector<1x8x67xf32> to vector<8x67xf32>
    %c0_2 = arith.constant 0 : index
    %c0_3 = arith.constant 0 : index
    %c0_4 = arith.constant 0 : index
    %2 = vector.load %arg2[%c0_2, %c0_3, %c0_4] : memref<1x8x67xf32, #tpu.memory_space<vmem>>, vector<1x8x67xf32>
    %3 = vector.shape_cast %2 : vector<1x8x67xf32> to vector<8x67xf32>
    %4 = tpu.iota {dimensions = array<i32: 1>} : vector<8x67xi32>
    %c9_i32 = arith.constant 9 : i32
    %5 = vector.broadcast %c9_i32 : i32 to vector<8x67xi32>
    %6 = arith.cmpi slt, %4, %5 : vector<8x67xi32>
    %7 = arith.mulf %1, %3 : vector<8x67xf32>
    %cst = arith.constant 0.000000e+00 : f32
    %8 = vector.broadcast %cst : f32 to vector<8x67xf32>
    %9 = arith.select %6, %7, %8 : vector<8x67xi1>, vector<8x67xf32>
    %cst_5 = arith.constant dense<0.000000e+00> : vector<8xf32>
    %10 = vector.multi_reduction <add>, %9, %cst_5 [1] : vector<8x67xf32> to vector<8xf32>
    %11 = vector.shape_cast %10 : vector<8xf32> to vector<8x1xf32>
    %cst_6 = arith.constant 1.000000e+00 : f32
    %12 = vector.broadcast %cst_6 : f32 to vector<8x1xf32>
    %13 = arith.subf %11, %12 : vector<8x1xf32>
    %cst_7 = arith.constant 5.000000e-01 : f32
    %14 = vector.broadcast %cst_7 : f32 to vector<8x1xf32>
    %15 = arith.mulf %13, %14 : vector<8x1xf32>
    %cst_8 = arith.constant -0.999998986 : f32
    %cst_9 = arith.constant 0.999998986 : f32
    %16 = vector.broadcast %cst_8 : f32 to vector<8x1xf32>
    %17 = arith.maximumf %16, %15 : vector<8x1xf32>
    %18 = vector.broadcast %cst_9 : f32 to vector<8x1xf32>
    %19 = arith.minimumf %18, %17 : vector<8x1xf32>
    %c0_10 = arith.constant 0 : index
    %c0_11 = arith.constant 0 : index
    %c0_12 = arith.constant 0 : index
    %20 = vector.load %arg3[%c0_10, %c0_11, %c0_12] : memref<1x8x1xf32, #tpu.memory_space<vmem>>, vector<1x8x1xf32>
    %21 = vector.shape_cast %20 : vector<1x8x1xf32> to vector<8x1xf32>
    %22 = vector.shape_cast %19 : vector<8x1xf32> to vector<1x8x1xf32>
    tpu.vector_store %arg3[%c0_10, %c0_11, %c0_12], %22 {strides = array<i32>} : memref<1x8x1xf32, #tpu.memory_space<vmem>>, vector<1x8x1xf32>,
    %23 = arith.subf %1, %3 : vector<8x67xf32>
    %c1_i32 = arith.constant 1 : i32
    %24 = tpu.dynamic_rotate %23 by %c1_i32 dim 0 : vector<8x67xf32>, i32 -> vector<8x67xf32>
    %25 = arith.subf %24, %23 : vector<8x67xf32>
    %c1_i32_13 = arith.constant 1 : i32
    %26 = tpu.dynamic_rotate %25 by %c1_i32_13 dim 0 : vector<8x67xf32>, i32 -> vector<8x67xf32>
    %27 = arith.subf %26, %25 : vector<8x67xf32>
    %28 = vector.extract_strided_slice %23 {offsets = [0, 0], sizes = [1, 67], strides = [1, 1]} : vector<8x67xf32> to vector<1x67xf32>
    %29 = vector.extract_strided_slice %23 {offsets = [1, 0], sizes = [1, 67], strides = [1, 1]} : vector<8x67xf32> to vector<1x67xf32>
    %30 = vector.extract_strided_slice %23 {offsets = [6, 0], sizes = [1, 67], strides = [1, 1]} : vector<8x67xf32> to vector<1x67xf32>
    %31 = vector.extract_strided_slice %23 {offsets = [7, 0], sizes = [1, 67], strides = [1, 1]} : vector<8x67xf32> to vector<1x67xf32>
    %32 = arith.subf %28, %31 : vector<1x67xf32>
    %33 = arith.addf %29, %31 : vector<1x67xf32>
    %cst_14 = arith.constant 2.000000e+00 : f32
    %34 = vector.broadcast %cst_14 : f32 to vector<1x67xf32>
    %35 = arith.mulf %34, %28 : vector<1x67xf32>
    %36 = arith.subf %33, %35 : vector<1x67xf32>
    %37 = arith.addf %28, %30 : vector<1x67xf32>
    %cst_15 = arith.constant 2.000000e+00 : f32
    %38 = vector.broadcast %cst_15 : f32 to vector<1x67xf32>
    %39 = arith.mulf %38, %31 : vector<1x67xf32>
    %40 = arith.subf %37, %39 : vector<1x67xf32>
    %41 = arith.mulf %23, %23 : vector<8x67xf32>
    %cst_16 = arith.constant dense<0.000000e+00> : vector<67xf32>
    %42 = vector.multi_reduction <add>, %41, %cst_16 [0] : vector<8x67xf32> to vector<67xf32>
    %43 = vector.shape_cast %42 : vector<67xf32> to vector<1x67xf32>
    %44 = arith.mulf %25, %25 : vector<8x67xf32>
    %cst_17 = arith.constant dense<0.000000e+00> : vector<67xf32>
    %45 = vector.multi_reduction <add>, %44, %cst_17 [0] : vector<8x67xf32> to vector<67xf32>
    %46 = vector.shape_cast %45 : vector<67xf32> to vector<1x67xf32>
    %47 = arith.mulf %32, %32 : vector<1x67xf32>
    %48 = arith.subf %46, %47 : vector<1x67xf32>
    %49 = arith.mulf %27, %27 : vector<8x67xf32>
    %cst_18 = arith.constant dense<0.000000e+00> : vector<67xf32>
    %50 = vector.multi_reduction <add>, %49, %cst_18 [0] : vector<8x67xf32> to vector<67xf32>
    %51 = vector.shape_cast %50 : vector<67xf32> to vector<1x67xf32>
    %52 = arith.mulf %36, %36 : vector<1x67xf32>
    %53 = arith.subf %51, %52 : vector<1x67xf32>
    %54 = arith.mulf %40, %40 : vector<1x67xf32>
    %55 = arith.subf %53, %54 : vector<1x67xf32>
    %56 = tpu.concatenate %43, %48, %55 in 0 : vector<1x67xf32>, vector<1x67xf32>, vector<1x67xf32> -> vector<3x67xf32>
    %c0_19 = arith.constant 0 : index
    %c0_20 = arith.constant 0 : index
    %c0_21 = arith.constant 0 : index
    %57 = vector.load %arg4[%c0_19, %c0_20, %c0_21] : memref<1x3x67xf32, #tpu.memory_space<vmem>>, vector<1x3x67xf32>
    %58 = vector.shape_cast %57 : vector<1x3x67xf32> to vector<3x67xf32>
    %59 = vector.shape_cast %56 : vector<3x67xf32> to vector<1x3x67xf32>
    tpu.vector_store %arg4[%c0_19, %c0_20, %c0_21], %59 {strides = array<i32>} : memref<1x3x67xf32, #tpu.memory_space<vmem>>, vector<1x3x67xf32>,
    return
  }
  func.func @transform_0(%arg0: i32) -> (i32, i32, i32) {
    %c0_i32 = arith.constant 0 : i32
    %c0_i32_0 = arith.constant 0 : i32
    %c0_i32_1 = arith.constant 0 : i32
    return %arg0, %c0_i32, %c0_i32_0 : i32, i32, i32
  }
  func.func @transform_1(%arg0: i32) -> (i32, i32, i32) {
    %c0_i32 = arith.constant 0 : i32
    %c0_i32_0 = arith.constant 0 : i32
    %c0_i32_1 = arith.constant 0 : i32
    return %arg0, %c0_i32, %c0_i32_0 : i32, i32, i32
  }
  func.func @transform_2(%arg0: i32) -> (i32, i32, i32) {
    %c0_i32 = arith.constant 0 : i32
    %c0_i32_0 = arith.constant 0 : i32
    %c0_i32_1 = arith.constant 0 : i32
    return %arg0, %c0_i32, %c0_i32_0 : i32, i32, i32
  }
  func.func @transform_3(%arg0: i32) -> (i32, i32, i32) {
    %c0_i32 = arith.constant 0 : i32
    %c0_i32_0 = arith.constant 0 : i32
    %c0_i32_1 = arith.constant 0 : i32
    return %arg0, %c0_i32, %c0_i32_0 : i32, i32, i32
  }
}

module attributes {stable_mosaic.version = 11 : i64} {
  func.func @_sq_diff_kernel(%arg0: i32, %arg1: i32, %arg2: memref<1x8x450xf32, #tpu.memory_space<vmem>>, %arg3: memref<1x8x450xf32, #tpu.memory_space<vmem>>, %arg4: memref<1x3x450xf32, #tpu.memory_space<vmem>>) attributes {dimension_semantics = [#tpu.dimension_semantics<parallel>, #tpu.dimension_semantics<parallel>], iteration_bounds = array<i64: 2, 1>, scalar_prefetch = 0 : i64, scratch_operands = 0 : i64, tpu.core_type = #tpu.core_type<tc>, window_params = [{transform_indices = @transform_0, window_bounds = array<i64: 1, 8, 450>}, {transform_indices = @transform_1, window_bounds = array<i64: 1, 8, 450>}, {transform_indices = @transform_2, window_bounds = array<i64: 1, 3, 450>}]} {
    %c0 = arith.constant 0 : index
    %c0_0 = arith.constant 0 : index
    %c0_1 = arith.constant 0 : index
    %0 = vector.load %arg2[%c0, %c0_0, %c0_1] : memref<1x8x450xf32, #tpu.memory_space<vmem>>, vector<1x8x450xf32>
    %1 = vector.shape_cast %0 : vector<1x8x450xf32> to vector<8x450xf32>
    %c0_2 = arith.constant 0 : index
    %c0_3 = arith.constant 0 : index
    %c0_4 = arith.constant 0 : index
    %2 = vector.load %arg3[%c0_2, %c0_3, %c0_4] : memref<1x8x450xf32, #tpu.memory_space<vmem>>, vector<1x8x450xf32>
    %3 = vector.shape_cast %2 : vector<1x8x450xf32> to vector<8x450xf32>
    %4 = arith.subf %1, %3 : vector<8x450xf32>
    %c1_i32 = arith.constant 1 : i32
    %5 = tpu.dynamic_rotate %4 by %c1_i32 dim 0 : vector<8x450xf32>, i32 -> vector<8x450xf32>
    %6 = arith.subf %5, %4 : vector<8x450xf32>
    %c1_i32_5 = arith.constant 1 : i32
    %7 = tpu.dynamic_rotate %6 by %c1_i32_5 dim 0 : vector<8x450xf32>, i32 -> vector<8x450xf32>
    %8 = arith.subf %7, %6 : vector<8x450xf32>
    %9 = vector.extract_strided_slice %4 {offsets = [0, 0], sizes = [1, 450], strides = [1, 1]} : vector<8x450xf32> to vector<1x450xf32>
    %10 = vector.extract_strided_slice %4 {offsets = [1, 0], sizes = [1, 450], strides = [1, 1]} : vector<8x450xf32> to vector<1x450xf32>
    %11 = vector.extract_strided_slice %4 {offsets = [6, 0], sizes = [1, 450], strides = [1, 1]} : vector<8x450xf32> to vector<1x450xf32>
    %12 = vector.extract_strided_slice %4 {offsets = [7, 0], sizes = [1, 450], strides = [1, 1]} : vector<8x450xf32> to vector<1x450xf32>
    %13 = arith.subf %9, %12 : vector<1x450xf32>
    %14 = arith.addf %10, %12 : vector<1x450xf32>
    %cst = arith.constant 2.000000e+00 : f32
    %15 = vector.broadcast %cst : f32 to vector<1x450xf32>
    %16 = arith.mulf %15, %9 : vector<1x450xf32>
    %17 = arith.subf %14, %16 : vector<1x450xf32>
    %18 = arith.addf %9, %11 : vector<1x450xf32>
    %cst_6 = arith.constant 2.000000e+00 : f32
    %19 = vector.broadcast %cst_6 : f32 to vector<1x450xf32>
    %20 = arith.mulf %19, %12 : vector<1x450xf32>
    %21 = arith.subf %18, %20 : vector<1x450xf32>
    %22 = arith.mulf %4, %4 : vector<8x450xf32>
    %cst_7 = arith.constant dense<0.000000e+00> : vector<450xf32>
    %23 = vector.multi_reduction <add>, %22, %cst_7 [0] : vector<8x450xf32> to vector<450xf32>
    %24 = vector.shape_cast %23 : vector<450xf32> to vector<1x450xf32>
    %25 = arith.mulf %6, %6 : vector<8x450xf32>
    %cst_8 = arith.constant dense<0.000000e+00> : vector<450xf32>
    %26 = vector.multi_reduction <add>, %25, %cst_8 [0] : vector<8x450xf32> to vector<450xf32>
    %27 = vector.shape_cast %26 : vector<450xf32> to vector<1x450xf32>
    %28 = arith.mulf %13, %13 : vector<1x450xf32>
    %29 = arith.subf %27, %28 : vector<1x450xf32>
    %30 = arith.mulf %8, %8 : vector<8x450xf32>
    %cst_9 = arith.constant dense<0.000000e+00> : vector<450xf32>
    %31 = vector.multi_reduction <add>, %30, %cst_9 [0] : vector<8x450xf32> to vector<450xf32>
    %32 = vector.shape_cast %31 : vector<450xf32> to vector<1x450xf32>
    %33 = arith.mulf %17, %17 : vector<1x450xf32>
    %34 = arith.subf %32, %33 : vector<1x450xf32>
    %35 = arith.mulf %21, %21 : vector<1x450xf32>
    %36 = arith.subf %34, %35 : vector<1x450xf32>
    %37 = tpu.concatenate %24, %29, %36 in 0 : vector<1x450xf32>, vector<1x450xf32>, vector<1x450xf32> -> vector<3x450xf32>
    %c0_10 = arith.constant 0 : index
    %c0_11 = arith.constant 0 : index
    %c0_12 = arith.constant 0 : index
    %38 = vector.load %arg4[%c0_10, %c0_11, %c0_12] : memref<1x3x450xf32, #tpu.memory_space<vmem>>, vector<1x3x450xf32>
    %39 = vector.shape_cast %38 : vector<1x3x450xf32> to vector<3x450xf32>
    %40 = vector.shape_cast %37 : vector<3x450xf32> to vector<1x3x450xf32>
    tpu.vector_store %arg4[%c0_10, %c0_11, %c0_12], %40 {strides = array<i32>} : memref<1x3x450xf32, #tpu.memory_space<vmem>>, vector<1x3x450xf32>,
    return
  }
  func.func @transform_0(%arg0: i32, %arg1: i32) -> (i32, i32, i32) {
    %c0_i32 = arith.constant 0 : i32
    %c0_i32_0 = arith.constant 0 : i32
    return %arg0, %c0_i32, %arg1 : i32, i32, i32
  }
  func.func @transform_1(%arg0: i32, %arg1: i32) -> (i32, i32, i32) {
    %c0_i32 = arith.constant 0 : i32
    %c0_i32_0 = arith.constant 0 : i32
    return %arg0, %c0_i32, %arg1 : i32, i32, i32
  }
  func.func @transform_2(%arg0: i32, %arg1: i32) -> (i32, i32, i32) {
    %c0_i32 = arith.constant 0 : i32
    %c0_i32_0 = arith.constant 0 : i32
    return %arg0, %c0_i32, %arg1 : i32, i32, i32
  }
}

</mosaic_0001>

<llo_original>
// kernel: face_loss.2
$region0: #{face_loss.2}
  #allocation0 [shape = 'u32[]', space=smem, size = 0x4, offset = 0x4, fixed_abs, tag = 'smem constant byte address 0x4 - core index']
  #allocation1 [shape = 'u32[144,128]{1,0:T(1,128)}', space=vmem, size = 0x12000, scoped, tag = 'internal scratch']
  %s0 = inlined_call_operand.vmem [shape: f32[2,8,67], index: 0, kind: input, shape index: {}]
  %s1 = inlined_call_operand.vmem [shape: f32[2,8,67], index: 1, kind: input, shape index: {}]
  %s2 = inlined_call_operand.vmem [shape: f32[2,8,1], index: 2, kind: output, shape index: {0}]
  %s3 = inlined_call_operand.vmem [shape: f32[2,3,67], index: 3, kind: output, shape index: {1}]
  %4 = xla_tuple %s2, %s3
  %s5 = sld [smem:[#allocation0]]
  $region49: #{face_loss.2} parent=0
    _
  %s7 = ssub.s32 1, %s5
  %s8 = scalar_select 0, %s7, %s5
  loop: start=0, step=1, limit=4
  $region2: #{face_loss.2} parent=0 // loop_pre_header
    _
  $region3: #{face_loss.2} parent=0 // loop_header
    %s10 = sphi 0, %s14
    %p11 = scmp.ge.s32.totalorder %s10, 4
    %s20 = sphi 0, %s22
    %s23 = sphi 0, %s20
    %s24 = sphi 0, %s23
    %s40 = sphi 0, %s24
    %s46 = sphi 0, %s48
    %s49 = sphi 0, %s46
    %s50 = sphi 0, %s49
    %s66 = sphi 0, %s50
    %s72 = sphi 0, %s74
    %s75 = sphi 0, %s72
    %s76 = sphi 0, %s75
    %s92 = sphi 0, %s76
    %s98 = sphi 0, %s100
    %s101 = sphi 0, %s98
    %s102 = sphi 0, %s101
    %s118 = sphi 0, %s102
  $region4: #{face_loss.2} parent=0 // loop_header_branch
    %13 = sbr.rel (%p11) target = $region8
  $region5: #{face_loss.2} parent=0 // loop_body
    %s15 = ssub.s32 %s10, 1
    %s16 = ssub.s32 %s10, 2
    %s17 = sadd.s32 %s10, 1
    %s18 = ssub.s32 %s10, %s17
    %p19 = scmp.eq.s32.totalorder %s18, 0
    %s21 = sadd.s32 %s20, 1
    %s22 = scalar_select %p19, %s20, %s21
    %p25 = pneg %p19
    %p26 = scmp.eq.s32.totalorder %s10, 1
    %p27 = por %p25, %p26
    %p28 = scmp.ne.s32.totalorder %s20, %s23
    %p29 = scmp.eq.s32.totalorder %s10, 0
    %p30 = por %p28, %p29
    %p31 = scmp.ne.s32.totalorder %s20, %s23
    %p32 = scmp.eq.s32.totalorder %s15, 1
    %p33 = por %p31, %p32
    %p34 = scmp.ne.s32.totalorder %s23, %s24
    %p35 = scmp.eq.s32.totalorder %s15, 0
    %p36 = por %p34, %p35
    %p37 = scmp.ne.s32.totalorder %s23, %s24
    %p38 = scmp.eq.s32.totalorder %s16, 1
    %p39 = por %p37, %p38
    %p41 = scmp.ne.s32.totalorder %s24, %s40
    %p42 = scmp.eq.s32.totalorder %s16, 0
    %p43 = por %p41, %p42
    %s44 = ssub.s32 %s10, %s17
    %p45 = scmp.eq.s32.totalorder %s44, 0
    %s47 = sadd.s32 %s46, 1
    %s48 = scalar_select %p45, %s46, %s47
    %p51 = pneg %p45
    %p52 = scmp.eq.s32.totalorder %s10, 1
    %p53 = por %p51, %p52
    %p54 = scmp.ne.s32.totalorder %s46, %s49
    %p55 = scmp.eq.s32.totalorder %s10, 0
    %p56 = por %p54, %p55
    %p57 = scmp.ne.s32.totalorder %s46, %s49
    %p58 = scmp.eq.s32.totalorder %s15, 1
    %p59 = por %p57, %p58
    %p60 = scmp.ne.s32.totalorder %s49, %s50
    %p61 = scmp.eq.s32.totalorder %s15, 0
    %p62 = por %p60, %p61
    %p63 = scmp.ne.s32.totalorder %s49, %s50
    %p64 = scmp.eq.s32.totalorder %s16, 1
    %p65 = por %p63, %p64
    %p67 = scmp.ne.s32.totalorder %s50, %s66
    %p68 = scmp.eq.s32.totalorder %s16, 0
    %p69 = por %p67, %p68
    %s70 = ssub.s32 %s10, %s17
    %p71 = scmp.eq.s32.totalorder %s70, 0
    %s73 = sadd.s32 %s72, 1
    %s74 = scalar_select %p71, %s72, %s73
    %p77 = pneg %p71
    %p78 = scmp.eq.s32.totalorder %s10, 1
    %p79 = por %p77, %p78
    %p80 = scmp.ne.s32.totalorder %s72, %s75
    %p81 = scmp.eq.s32.totalorder %s10, 0
    %p82 = por %p80, %p81
    %p83 = scmp.ne.s32.totalorder %s72, %s75
    %p84 = scmp.eq.s32.totalorder %s15, 1
    %p85 = por %p83, %p84
    %p86 = scmp.ne.s32.totalorder %s75, %s76
    %p87 = scmp.eq.s32.totalorder %s15, 0
    %p88 = por %p86, %p87
    %p89 = scmp.ne.s32.totalorder %s75, %s76
    %p90 = scmp.eq.s32.totalorder %s16, 1
    %p91 = por %p89, %p90
    %p93 = scmp.ne.s32.totalorder %s76, %s92
    %p94 = scmp.eq.s32.totalorder %s16, 0
    %p95 = por %p93, %p94
    %s96 = ssub.s32 %s10, %s17
    %p97 = scmp.eq.s32.totalorder %s96, 0
    %s99 = sadd.s32 %s98, 1
    %s100 = scalar_select %p97, %s98, %s99
    %p103 = pneg %p97
    %p104 = scmp.eq.s32.totalorder %s10, 1
    %p105 = por %p103, %p104
    %p106 = scmp.ne.s32.totalorder %s98, %s101
    %p107 = scmp.eq.s32.totalorder %s10, 0
    %p108 = por %p106, %p107
    %p109 = scmp.ne.s32.totalorder %s98, %s101
    %p110 = scmp.eq.s32.totalorder %s15, 1
    %p111 = por %p109, %p110
    %p112 = scmp.ne.s32.totalorder %s101, %s102
    %p113 = scmp.eq.s32.totalorder %s15, 0
    %p114 = por %p112, %p113
    %p115 = scmp.ne.s32.totalorder %s101, %s102
    %p116 = scmp.eq.s32.totalorder %s16, 1
    %p117 = por %p115, %p116
    %p119 = scmp.ne.s32.totalorder %s102, %s118
    %p120 = scmp.eq.s32.totalorder %s16, 0
    %p121 = por %p119, %p120
    %p122 = scmp.le.s32.totalorder 1, %s10
    %p123 = scmp.lt.s32.totalorder %s10, 3
    %p124 = pnand %p122, %p123
    %p125 = pneg %p124
    // Predicated region
    $region9: #{face_loss.2} parent=5 // pred_check
      _
    $region10: #{face_loss.2} parent=5 // pred_check_branch
      %127 = sbr.rel (%p124) target = $region12
    $region11: #{face_loss.2} parent=5 // pred_region
      %s128 = ssub.s32 %s10, 1
    $region12: #{face_loss.2} parent=5 // pred_fallthru
      _
    %p129 = scmp.lt.s32.totalorder %s10, 2
    // Predicated region
    $region13: #{face_loss.2} parent=5 // pred_check
      %p130 = pneg %p129
    $region14: #{face_loss.2} parent=5 // pred_check_branch
      %132 = sbr.rel (%p130) target = $region16
    $region15: #{face_loss.2} parent=5 // pred_region
      // Predicated region
      $region17: #{face_loss.2} parent=15 // pred_check
        %p133 = pneg %p30
      $region18: #{face_loss.2} parent=15 // pred_check_branch
        %135 = sbr.rel (%p133) target = $region20
      $region19: #{face_loss.2} parent=15 // pred_region
        %p136 = scmp.lt.s32.totalorder %s10, 1
        %s137 = scalar_select %p136, %s10, 1
        %s138 = smul.addr %s137, 8
        %s139 = scalar_lea.vmem %s0, %s138
      $region20: #{face_loss.2} parent=15 // pred_fallthru
        _
      // Predicated region
      $region21: #{face_loss.2} parent=15 // pred_check
        %p140 = pneg %p56
      $region22: #{face_loss.2} parent=15 // pred_check_branch
        %142 = sbr.rel (%p140) target = $region24
      $region23: #{face_loss.2} parent=15 // pred_region
        %p143 = scmp.lt.s32.totalorder %s10, 1
        %s144 = scalar_select %p143, %s10, 1
        %s145 = smul.addr %s144, 8
        %s146 = scalar_lea.vmem %s1, %s145
      $region24: #{face_loss.2} parent=15 // pred_fallthru
        _
    $region16: #{face_loss.2} parent=5 // pred_fallthru
      _
    %p147 = scmp.le.s32.totalorder 1, %s10
    %p148 = scmp.lt.s32.totalorder %s10, 3
    %p149 = pnand %p147, %p148
    %p150 = pneg %p149
    // Predicated region
    $region25: #{face_loss.2} parent=5 // pred_check
      _
    $region26: #{face_loss.2} parent=5 // pred_check_branch
      %152 = sbr.rel (%p149) target = $region28
    $region27: #{face_loss.2} parent=5 // pred_region
      %s153 = ssub.s32 %s10, 1
      %p154 = scmp.lt.s32.totalorder %s15, 1
      %s155 = scalar_select %p154, %s15, 1
      %s156 = smul.addr %s155, 8
      %s157 = scalar_lea.vmem %s0, %s156
      %p158 = pneg %p36
      %p159 = pneg %p33
      %p160 = scmp.lt.s32.totalorder %s15, 1
      %s161 = scalar_select %p160, %s15, 1
      %s162 = smul.addr %s161, 8
      %s163 = scalar_lea.vmem %s1, %s162
      %p164 = pneg %p62
      %p165 = pneg %p59
      %p166 = pneg %p88
      %p167 = pneg %p85
      %p168 = scmp.lt.s32.totalorder %s15, 1
      %s169 = scalar_select %p168, %s15, 1
      %s170 = smul.addr %s169, 8
      %s171 = scalar_lea.vmem %s2, %s170
      %p172 = pneg %p114
      %p173 = pneg %p111
      %p174 = scmp.lt.s32.totalorder %s15, 1
      %s175 = scalar_select %p174, %s15, 1
      %s176 = smul.addr %s175, 4
      %s177 = scalar_lea.vmem %s3, %s176
      %p178 = scmp.lt.s32.totalorder %s15, 1
      %s179 = scalar_select %p178, %s15, 1
      %s180 = smul.addr %s179, 8
      %s181 = scalar_lea.vmem %s0, %s180
      %p182 = scmp.lt.s32.totalorder %s15, 1
      %s183 = scalar_select %p182, %s15, 1
      %s184 = smul.addr %s183, 8
      %s185 = scalar_lea.vmem %s1, %s184
      %p186 = scmp.lt.s32.totalorder %s15, 1
      %s187 = scalar_select %p186, %s15, 1
      %s188 = smul.addr %s187, 8
      %s189 = scalar_lea.vmem %s2, %s188
      %p190 = scmp.lt.s32.totalorder %s15, 1
      %s191 = scalar_select %p190, %s15, 1
      %s192 = smul.addr %s191, 4
      %s193 = scalar_lea.vmem %s3, %s192
      %v194 = vld [vmem:[%s181] sm:$0xff]
      %v195 = vld [vmem:[%s185] sm:$0xff]
      %v196 = vlaneseq
      %v197 = vand.u32 %v196, 127
      %vm198 = vcmp.lt.s32.totalorder %v197, 9
      %v199 = vmul.f32 %v194, %v195
      %v200 = vsel %vm198, %v199, 0.0
      %vm201 = vcmask 547840
      %v202 = vsel %vm201, %v200, 0.0
      %203 = vadd.xlane.f32.xlu0 %v202
      %v204 = vpop.xlane.xlu0 %203
      %v205 = vsub.f32 %v204, 1.0
      %v206 = vmul.f32 %v205, 0.5
      %v207 = vmax.f32 %v206, -0.999999
      %v208 = vmin.f32 %v207, 0.999999
      %vm209 = vcmask 7168
      %210 = vst.msk [vmem:[%s189] sm:$0xff] %vm209, %v208
      %v211 = vsub.f32 %v194, %v195
      %v212 = vrot.slane %v211, 7
      %v213 = vsub.f32 %v212, %v211
      %v214 = vrot.slane %v213, 7
      %v215 = vsub.f32 %v214, %v213
      %v217 = vrot.slane %v211, 7
      %v219 = vsub.f32 %v211, %v217
      %v220 = vrot.slane %v211, 6
      %v222 = vadd.f32 %v211, %v220
      %v223 = vmul.f32 %v211, 2.0
      %v225 = vrot.slane %v223, 7
      %v227 = vsub.f32 %v222, %v225
      %v228 = vmul.f32 %v211, %v211
      %v229 = vsel %vm201, %v228, 0.0
      %v230 = vrot.slane %v229, 4
      %v231 = vadd.f32 %v229, %v230
      %v232 = vrot.slane %v231, 2
      %v233 = vadd.f32 %v231, %v232
      %v234 = vrot.slane %v233, 1
      %v235 = vadd.f32 %v233, %v234
      %v236 = vmul.f32 %v213, %v213
      %v237 = vsel %vm201, %v236, 0.0
      %v238 = vrot.slane %v237, 4
      %v239 = vadd.f32 %v237, %v238
      %v240 = vrot.slane %v239, 2
      %v241 = vadd.f32 %v239, %v240
      %v242 = vrot.slane %v241, 1
      %v243 = vadd.f32 %v241, %v242
      %v244 = vmul.f32 %v219, %v219
      %v245 = vsub.f32 %v243, %v244
      %v246 = vmul.f32 %v215, %v215
      %v247 = vsel %vm201, %v246, 0.0
      %v248 = vrot.slane %v247, 4
      %v249 = vadd.f32 %v247, %v248
      %v250 = vrot.slane %v249, 2
      %v251 = vadd.f32 %v249, %v250
      %v252 = vrot.slane %v251, 1
      %v253 = vadd.f32 %v251, %v252
      %v254 = vmul.f32 %v227, %v227
      %v255 = vsub.f32 %v253, %v254
      %v257 = vrot.slane %v254, 7
      %v259 = vsub.f32 %v255, %v257
      %v261 = vrot.slane %v245, 7
      %v264 = vrot.slane %v259, 7
      %vm266 = vcmask 1040384
      %v267 = vsel %vm266, %v235, %v261
      %vm268 = vcmask 1041408
      %v269 = vsel %vm268, %v267, %v264
      %vm270 = vcmask 542720
      %271 = vst.msk [vmem:[%s193] sm:$0x7] %vm270, %v269
      %p272 = scmp.lt.s32.totalorder %s15, 1
      %s273 = scalar_select %p272, %s15, 1
      %s274 = smul.addr %s273, 8
      %s275 = scalar_lea.vmem %s2, %s274
      %p276 = scmp.lt.s32.totalorder %s15, 1
      %s277 = scalar_select %p276, %s15, 1
      %s278 = smul.addr %s277, 4
      %s279 = scalar_lea.vmem %s3, %s278
      // Predicated region
      $region29: #{face_loss.2} parent=27 // pred_check
        %p280 = pneg %p85
      $region30: #{face_loss.2} parent=27 // pred_check_branch
        %282 = sbr.rel (%p280) target = $region32
      $region31: #{face_loss.2} parent=27 // pred_region
        _
      $region32: #{face_loss.2} parent=27 // pred_fallthru
        _
      // Predicated region
      $region33: #{face_loss.2} parent=27 // pred_check
        %p283 = pneg %p111
      $region34: #{face_loss.2} parent=27 // pred_check_branch
        %285 = sbr.rel (%p283) target = $region36
      $region35: #{face_loss.2} parent=27 // pred_region
        _
      $region36: #{face_loss.2} parent=27 // pred_fallthru
        _
    $region28: #{face_loss.2} parent=5 // pred_fallthru
      _
    %p286 = scmp.le.s32.totalorder 2, %s10
    // Predicated region
    $region37: #{face_loss.2} parent=5 // pred_check
      %p287 = pneg %p286
    $region38: #{face_loss.2} parent=5 // pred_check_branch
      %289 = sbr.rel (%p287) target = $region40
    $region39: #{face_loss.2} parent=5 // pred_region
      %s290 = ssub.s32 %s10, 2
      // Predicated region
      $region41: #{face_loss.2} parent=39 // pred_check
        %p291 = pneg %p91
      $region42: #{face_loss.2} parent=39 // pred_check_branch
        %293 = sbr.rel (%p291) target = $region44
      $region43: #{face_loss.2} parent=39 // pred_region
        %p294 = scmp.lt.s32.totalorder %s16, 1
        %s295 = scalar_select %p294, %s16, 1
        %s296 = smul.addr %s295, 8
        %s297 = scalar_lea.vmem %s2, %s296
      $region44: #{face_loss.2} parent=39 // pred_fallthru
        _
      // Predicated region
      $region45: #{face_loss.2} parent=39 // pred_check
        %p298 = pneg %p117
      $region46: #{face_loss.2} parent=39 // pred_check_branch
        %300 = sbr.rel (%p298) target = $region48
      $region47: #{face_loss.2} parent=39 // pred_region
        %p301 = scmp.lt.s32.totalorder %s16, 1
        %s302 = scalar_select %p301, %s16, 1
        %s303 = smul.addr %s302, 4
        %s304 = scalar_lea.vmem %s3, %s303
      $region48: #{face_loss.2} parent=39 // pred_fallthru
        _
    $region40: #{face_loss.2} parent=5 // pred_fallthru
      _
  $region6: #{face_loss.2} parent=0 // loop_footer
    %s14 = sadd.s32 1, %s10
  $region7: #{face_loss.2} parent=0 // loop_footer_branch
    %9 = sbr.rel target = $region3
  $region8: #{face_loss.2} parent=0 // loop_exit
    _

// kernel: face_loss.3
$region0: #{face_loss.3}
  #allocation0 [shape = 'u32[]', space=smem, size = 0x4, offset = 0x4, fixed_abs, tag = 'smem constant byte address 0x4 - core index']
  #allocation1 [shape = 'u32[144,128]{1,0:T(1,128)}', space=vmem, size = 0x12000, scoped, tag = 'internal scratch']
  %s0 = inlined_call_operand.vmem [shape: f32[2,8,450], index: 0, kind: input, shape index: {}]
  %s1 = inlined_call_operand.vmem [shape: f32[2,8,450], index: 1, kind: input, shape index: {}]
  %s2 = inlined_call_operand.vmem [shape: f32[2,3,450], index: 2, kind: output, shape index: {}]
  %s3 = sld [smem:[#allocation0]]
  $region41: #{face_loss.3} parent=0
    _
  %s5 = ssub.s32 1, %s3
  %s6 = scalar_select 0, %s5, %s3
  loop: start=0, step=1, limit=4
  $region2: #{face_loss.3} parent=0 // loop_pre_header
    _
  $region3: #{face_loss.3} parent=0 // loop_header
    %s8 = sphi 0, %s12
    %p9 = scmp.ge.s32.totalorder %s8, 4
    %s15 = sphi 0, %s27
    %s16 = sphi 0, %s23
    %s17 = sphi 0, %s15
    %s18 = sphi 0, %s16
    %s19 = sphi 0, %s17
    %s20 = sphi 0, %s18
    %s32 = sphi 0, %s34
    %s35 = sphi 0, %s32
    %s36 = sphi 0, %s35
    %s52 = sphi 0, %s36
    %s60 = sphi 0, %s62
    %s63 = sphi 0, %s60
    %s64 = sphi 0, %s63
    %s80 = sphi 0, %s64
    %s88 = sphi 0, %s90
    %s91 = sphi 0, %s88
    %s92 = sphi 0, %s91
    %s108 = sphi 0, %s92
  $region4: #{face_loss.3} parent=0 // loop_header_branch
    %11 = sbr.rel (%p9) target = $region8
  $region5: #{face_loss.3} parent=0 // loop_body
    %s13 = ssub.s32 %s8, 1
    %s14 = ssub.s32 %s8, 2
    %s21 = sadd.s32 1, %s16
    %p22 = scmp.ge.s32.totalorder %s21, 1
    %s23 = scalar_select %p22, 0, %s21
    %s24 = sadd.s32 1, %s15
    %s25 = scalar_select %p22, %s24, %s15
    %p26 = scmp.ge.s32.totalorder %s25, 2
    %s27 = scalar_select %p26, 0, %s25
    %s28 = ssub.s32 %s15, %s27
    %s29 = ssub.s32 %s16, %s23
    %s30 = sor.u32 %s28, %s29
    %p31 = scmp.eq.s32.totalorder %s30, 0
    %s33 = sadd.s32 %s32, 1
    %s34 = scalar_select %p31, %s32, %s33
    %p37 = pneg %p31
    %p38 = scmp.eq.s32.totalorder %s8, 1
    %p39 = por %p37, %p38
    %p40 = scmp.ne.s32.totalorder %s32, %s35
    %p41 = scmp.eq.s32.totalorder %s8, 0
    %p42 = por %p40, %p41
    %p43 = scmp.ne.s32.totalorder %s32, %s35
    %p44 = scmp.eq.s32.totalorder %s13, 1
    %p45 = por %p43, %p44
    %p46 = scmp.ne.s32.totalorder %s35, %s36
    %p47 = scmp.eq.s32.totalorder %s13, 0
    %p48 = por %p46, %p47
    %p49 = scmp.ne.s32.totalorder %s35, %s36
    %p50 = scmp.eq.s32.totalorder %s14, 1
    %p51 = por %p49, %p50
    %p53 = scmp.ne.s32.totalorder %s36, %s52
    %p54 = scmp.eq.s32.totalorder %s14, 0
    %p55 = por %p53, %p54
    %s56 = ssub.s32 %s15, %s27
    %s57 = ssub.s32 %s16, %s23
    %s58 = sor.u32 %s56, %s57
    %p59 = scmp.eq.s32.totalorder %s58, 0
    %s61 = sadd.s32 %s60, 1
    %s62 = scalar_select %p59, %s60, %s61
    %p65 = pneg %p59
    %p66 = scmp.eq.s32.totalorder %s8, 1
    %p67 = por %p65, %p66
    %p68 = scmp.ne.s32.totalorder %s60, %s63
    %p69 = scmp.eq.s32.totalorder %s8, 0
    %p70 = por %p68, %p69
    %p71 = scmp.ne.s32.totalorder %s60, %s63
    %p72 = scmp.eq.s32.totalorder %s13, 1
    %p73 = por %p71, %p72
    %p74 = scmp.ne.s32.totalorder %s63, %s64
    %p75 = scmp.eq.s32.totalorder %s13, 0
    %p76 = por %p74, %p75
    %p77 = scmp.ne.s32.totalorder %s63, %s64
    %p78 = scmp.eq.s32.totalorder %s14, 1
    %p79 = por %p77, %p78
    %p81 = scmp.ne.s32.totalorder %s64, %s80
    %p82 = scmp.eq.s32.totalorder %s14, 0
    %p83 = por %p81, %p82
    %s84 = ssub.s32 %s15, %s27
    %s85 = ssub.s32 %s16, %s23
    %s86 = sor.u32 %s84, %s85
    %p87 = scmp.eq.s32.totalorder %s86, 0
    %s89 = sadd.s32 %s88, 1
    %s90 = scalar_select %p87, %s88, %s89
    %p93 = pneg %p87
    %p94 = scmp.eq.s32.totalorder %s8, 1
    %p95 = por %p93, %p94
    %p96 = scmp.ne.s32.totalorder %s88, %s91
    %p97 = scmp.eq.s32.totalorder %s8, 0
    %p98 = por %p96, %p97
    %p99 = scmp.ne.s32.totalorder %s88, %s91
    %p100 = scmp.eq.s32.totalorder %s13, 1
    %p101 = por %p99, %p100
    %p102 = scmp.ne.s32.totalorder %s91, %s92
    %p103 = scmp.eq.s32.totalorder %s13, 0
    %p104 = por %p102, %p103
    %p105 = scmp.ne.s32.totalorder %s91, %s92
    %p106 = scmp.eq.s32.totalorder %s14, 1
    %p107 = por %p105, %p106
    %p109 = scmp.ne.s32.totalorder %s92, %s108
    %p110 = scmp.eq.s32.totalorder %s14, 0
    %p111 = por %p109, %p110
    %p112 = scmp.le.s32.totalorder 1, %s8
    %p113 = scmp.lt.s32.totalorder %s8, 3
    %p114 = pnand %p112, %p113
    %p115 = pneg %p114
    // Predicated region
    $region9: #{face_loss.3} parent=5 // pred_check
      _
    $region10: #{face_loss.3} parent=5 // pred_check_branch
      %117 = sbr.rel (%p114) target = $region12
    $region11: #{face_loss.3} parent=5 // pred_region
      %s118 = ssub.s32 %s8, 1
    $region12: #{face_loss.3} parent=5 // pred_fallthru
      _
    %p119 = scmp.lt.s32.totalorder %s8, 2
    // Predicated region
    $region13: #{face_loss.3} parent=5 // pred_check
      %p120 = pneg %p119
    $region14: #{face_loss.3} parent=5 // pred_check_branch
      %122 = sbr.rel (%p120) target = $region16
    $region15: #{face_loss.3} parent=5 // pred_region
      // Predicated region
      $region17: #{face_loss.3} parent=15 // pred_check
        %p123 = pneg %p42
      $region18: #{face_loss.3} parent=15 // pred_check_branch
        %125 = sbr.rel (%p123) target = $region20
      $region19: #{face_loss.3} parent=15 // pred_region
        %s126 = smul.u32 4, %s16
        %p127 = scmp.lt.s32.totalorder %s15, 1
        %s128 = scalar_select %p127, %s15, 1
        %p129 = scmp.lt.s32.totalorder %s126, 3
        %s130 = scalar_select %p129, %s126, 3
        %s131 = smul.addr %s128, 4
        %s132 = sadd.s32 %s130, %s131
        %s133 = smul.addr %s132, 8
        %s134 = scalar_lea.vmem %s0, %s133
        %s135 = smul.u32 4, %s16
      $region20: #{face_loss.3} parent=15 // pred_fallthru
        _
      // Predicated region
      $region21: #{face_loss.3} parent=15 // pred_check
        %p136 = pneg %p70
      $region22: #{face_loss.3} parent=15 // pred_check_branch
        %138 = sbr.rel (%p136) target = $region24
      $region23: #{face_loss.3} parent=15 // pred_region
        %s139 = smul.u32 4, %s16
        %p140 = scmp.lt.s32.totalorder %s15, 1
        %s141 = scalar_select %p140, %s15, 1
        %p142 = scmp.lt.s32.totalorder %s139, 3
        %s143 = scalar_select %p142, %s139, 3
        %s144 = smul.addr %s141, 4
        %s145 = sadd.s32 %s143, %s144
        %s146 = smul.addr %s145, 8
        %s147 = scalar_lea.vmem %s1, %s146
        %s148 = smul.u32 4, %s16
      $region24: #{face_loss.3} parent=15 // pred_fallthru
        _
    $region16: #{face_loss.3} parent=5 // pred_fallthru
      _
    %p149 = scmp.le.s32.totalorder 1, %s8
    %p150 = scmp.lt.s32.totalorder %s8, 3
    %p151 = pnand %p149, %p150
    %p152 = pneg %p151
    // Predicated region
    $region25: #{face_loss.3} parent=5 // pred_check
      _
    $region26: #{face_loss.3} parent=5 // pred_check_branch
      %154 = sbr.rel (%p151) target = $region28
    $region27: #{face_loss.3} parent=5 // pred_region
      %s155 = ssub.s32 %s8, 1
      %s156 = smul.u32 4, %s18
      %p157 = scmp.lt.s32.totalorder %s17, 1
      %s158 = scalar_select %p157, %s17, 1
      %p159 = scmp.lt.s32.totalorder %s156, 3
      %s160 = scalar_select %p159, %s156, 3
      %s161 = smul.addr %s158, 4
      %s162 = sadd.s32 %s160, %s161
      %s163 = smul.addr %s162, 8
      %s164 = scalar_lea.vmem %s0, %s163
      %p165 = pneg %p48
      %p166 = pneg %p45
      %s167 = smul.u32 4, %s18
      %p168 = scmp.lt.s32.totalorder %s17, 1
      %s169 = scalar_select %p168, %s17, 1
      %p170 = scmp.lt.s32.totalorder %s167, 3
      %s171 = scalar_select %p170, %s167, 3
      %s172 = smul.addr %s169, 4
      %s173 = sadd.s32 %s171, %s172
      %s174 = smul.addr %s173, 8
      %s175 = scalar_lea.vmem %s1, %s174
      %p176 = pneg %p76
      %p177 = pneg %p73
      %p178 = pneg %p104
      %p179 = pneg %p101
      %s180 = smul.u32 4, %s18
      %p181 = scmp.lt.s32.totalorder %s17, 1
      %s182 = scalar_select %p181, %s17, 1
      %p183 = scmp.lt.s32.totalorder %s180, 3
      %s184 = scalar_select %p183, %s180, 3
      %s185 = smul.addr %s182, 4
      %s186 = sadd.s32 %s184, %s185
      %s187 = smul.addr %s186, 4
      %s188 = scalar_lea.vmem %s2, %s187
      %s189 = smul.u32 4, %s18
      %p190 = scmp.lt.s32.totalorder %s17, 1
      %s191 = scalar_select %p190, %s17, 1
      %p192 = scmp.lt.s32.totalorder %s189, 3
      %s193 = scalar_select %p192, %s189, 3
      %s194 = smul.addr %s191, 4
      %s195 = sadd.s32 %s193, %s194
      %s196 = smul.addr %s195, 8
      %s197 = scalar_lea.vmem %s0, %s196
      %s198 = smul.u32 4, %s18
      %s199 = smul.u32 4, %s18
      %p200 = scmp.lt.s32.totalorder %s17, 1
      %s201 = scalar_select %p200, %s17, 1
      %p202 = scmp.lt.s32.totalorder %s199, 3
      %s203 = scalar_select %p202, %s199, 3
      %s204 = smul.addr %s201, 4
      %s205 = sadd.s32 %s203, %s204
      %s206 = smul.addr %s205, 8
      %s207 = scalar_lea.vmem %s1, %s206
      %s208 = smul.u32 4, %s18
      %s209 = smul.u32 4, %s18
      %p210 = scmp.lt.s32.totalorder %s17, 1
      %s211 = scalar_select %p210, %s17, 1
      %p212 = scmp.lt.s32.totalorder %s209, 3
      %s213 = scalar_select %p212, %s209, 3
      %s214 = smul.addr %s211, 4
      %s215 = sadd.s32 %s213, %s214
      %s216 = smul.addr %s215, 4
      %s217 = scalar_lea.vmem %s2, %s216
      %s218 = smul.u32 4, %s18
      %v219 = vld [vmem:[%s197] sm:$0xff]
      %v220 = vld [vmem:[%s197 + $0x8] sm:$0xff]
      %v221 = vld [vmem:[%s197 + $0x10] sm:$0xff]
      %v222 = vld [vmem:[%s197 + $0x18] sm:$0xff]
      %v223 = vld [vmem:[%s207] sm:$0xff]
      %v224 = vld [vmem:[%s207 + $0x8] sm:$0xff]
      %v225 = vld [vmem:[%s207 + $0x10] sm:$0xff]
      %v226 = vld [vmem:[%s207 + $0x18] sm:$0xff]
      %v227 = vsub.f32 %v219, %v223
      %v228 = vsub.f32 %v220, %v224
      %v229 = vsub.f32 %v221, %v225
      %v230 = vsub.f32 %v222, %v226
      %v231 = vrot.slane %v227, 7
      %v232 = vrot.slane %v228, 7
      %v233 = vrot.slane %v229, 7
      %v234 = vrot.slane %v230, 7
      %v235 = vsub.f32 %v231, %v227
      %v236 = vsub.f32 %v232, %v228
      %v237 = vsub.f32 %v233, %v229
      %v238 = vsub.f32 %v234, %v230
      %v239 = vrot.slane %v235, 7
      %v240 = vrot.slane %v236, 7
      %v241 = vrot.slane %v237, 7
      %v242 = vrot.slane %v238, 7
      %v243 = vsub.f32 %v239, %v235
      %v244 = vsub.f32 %v240, %v236
      %v245 = vsub.f32 %v241, %v237
      %v246 = vsub.f32 %v242, %v238
      %v251 = vrot.slane %v227, 7
      %v252 = vrot.slane %v228, 7
      %v253 = vrot.slane %v229, 7
      %v254 = vrot.slane %v230, 7
      %v259 = vsub.f32 %v227, %v251
      %v260 = vsub.f32 %v228, %v252
      %v261 = vsub.f32 %v229, %v253
      %v262 = vsub.f32 %v230, %v254
      %v263 = vrot.slane %v227, 6
      %v264 = vrot.slane %v228, 6
      %v265 = vrot.slane %v229, 6
      %v266 = vrot.slane %v230, 6
      %v271 = vadd.f32 %v227, %v263
      %v272 = vadd.f32 %v228, %v264
      %v273 = vadd.f32 %v229, %v265
      %v274 = vadd.f32 %v230, %v266
      %v275 = vmul.f32 %v227, 2.0
      %v276 = vmul.f32 %v228, 2.0
      %v277 = vmul.f32 %v229, 2.0
      %v278 = vmul.f32 %v230, 2.0
      %v283 = vrot.slane %v275, 7
      %v284 = vrot.slane %v276, 7
      %v285 = vrot.slane %v277, 7
      %v286 = vrot.slane %v278, 7
      %v291 = vsub.f32 %v271, %v283
      %v292 = vsub.f32 %v272, %v284
      %v293 = vsub.f32 %v273, %v285
      %v294 = vsub.f32 %v274, %v286
      %v295 = vmul.f32 %v227, %v227
      %v296 = vmul.f32 %v228, %v228
      %v297 = vmul.f32 %v229, %v229
      %v298 = vmul.f32 %v230, %v230
      %v299 = vrot.slane %v295, 4
      %v300 = vadd.f32 %v295, %v299
      %v301 = vrot.slane %v300, 2
      %v302 = vadd.f32 %v300, %v301
      %v303 = vrot.slane %v302, 1
      %v304 = vadd.f32 %v302, %v303
      %v305 = vrot.slane %v296, 4
      %v306 = vadd.f32 %v296, %v305
      %v307 = vrot.slane %v306, 2
      %v308 = vadd.f32 %v306, %v307
      %v309 = vrot.slane %v308, 1
      %v310 = vadd.f32 %v308, %v309
      %v311 = vrot.slane %v297, 4
      %v312 = vadd.f32 %v297, %v311
      %v313 = vrot.slane %v312, 2
      %v314 = vadd.f32 %v312, %v313
      %v315 = vrot.slane %v314, 1
      %v316 = vadd.f32 %v314, %v315
      %vm317 = vcmask 539648
      %v318 = vsel %vm317, %v298, 0.0
      %v319 = vrot.slane %v318, 4
      %v320 = vadd.f32 %v318, %v319
      %v321 = vrot.slane %v320, 2
      %v322 = vadd.f32 %v320, %v321
      %v323 = vrot.slane %v322, 1
      %v324 = vadd.f32 %v322, %v323
      %v325 = vmul.f32 %v235, %v235
      %v326 = vmul.f32 %v236, %v236
      %v327 = vmul.f32 %v237, %v237
      %v328 = vmul.f32 %v238, %v238
      %v329 = vrot.slane %v325, 4
      %v330 = vadd.f32 %v325, %v329
      %v331 = vrot.slane %v330, 2
      %v332 = vadd.f32 %v330, %v331
      %v333 = vrot.slane %v332, 1
      %v334 = vadd.f32 %v332, %v333
      %v335 = vrot.slane %v326, 4
      %v336 = vadd.f32 %v326, %v335
      %v337 = vrot.slane %v336, 2
      %v338 = vadd.f32 %v336, %v337
      %v339 = vrot.slane %v338, 1
      %v340 = vadd.f32 %v338, %v339
      %v341 = vrot.slane %v327, 4
      %v342 = vadd.f32 %v327, %v341
      %v343 = vrot.slane %v342, 2
      %v344 = vadd.f32 %v342, %v343
      %v345 = vrot.slane %v344, 1
      %v346 = vadd.f32 %v344, %v345
      %v347 = vsel %vm317, %v328, 0.0
      %v348 = vrot.slane %v347, 4
      %v349 = vadd.f32 %v347, %v348
      %v350 = vrot.slane %v349, 2
      %v351 = vadd.f32 %v349, %v350
      %v352 = vrot.slane %v351, 1
      %v353 = vadd.f32 %v351, %v352
      %v354 = vmul.f32 %v259, %v259
      %v355 = vmul.f32 %v260, %v260
      %v356 = vmul.f32 %v261, %v261
      %v357 = vmul.f32 %v262, %v262
      %v358 = vsub.f32 %v334, %v354
      %v359 = vsub.f32 %v340, %v355
      %v360 = vsub.f32 %v346, %v356
      %v361 = vsub.f32 %v353, %v357
      %v362 = vmul.f32 %v243, %v243
      %v363 = vmul.f32 %v244, %v244
      %v364 = vmul.f32 %v245, %v245
      %v365 = vmul.f32 %v246, %v246
      %v366 = vrot.slane %v362, 4
      %v367 = vadd.f32 %v362, %v366
      %v368 = vrot.slane %v367, 2
      %v369 = vadd.f32 %v367, %v368
      %v370 = vrot.slane %v369, 1
      %v371 = vadd.f32 %v369, %v370
      %v372 = vrot.slane %v363, 4
      %v373 = vadd.f32 %v363, %v372
      %v374 = vrot.slane %v373, 2
      %v375 = vadd.f32 %v373, %v374
      %v376 = vrot.slane %v375, 1
      %v377 = vadd.f32 %v375, %v376
      %v378 = vrot.slane %v364, 4
      %v379 = vadd.f32 %v364, %v378
      %v380 = vrot.slane %v379, 2
      %v381 = vadd.f32 %v379, %v380
      %v382 = vrot.slane %v381, 1
      %v383 = vadd.f32 %v381, %v382
      %v384 = vsel %vm317, %v365, 0.0
      %v385 = vrot.slane %v384, 4
      %v386 = vadd.f32 %v384, %v385
      %v387 = vrot.slane %v386, 2
      %v388 = vadd.f32 %v386, %v387
      %v389 = vrot.slane %v388, 1
      %v390 = vadd.f32 %v388, %v389
      %v391 = vmul.f32 %v291, %v291
      %v392 = vmul.f32 %v292, %v292
      %v393 = vmul.f32 %v293, %v293
      %v394 = vmul.f32 %v294, %v294
      %v395 = vsub.f32 %v371, %v391
      %v396 = vsub.f32 %v377, %v392
      %v397 = vsub.f32 %v383, %v393
      %v398 = vsub.f32 %v390, %v394
      %v403 = vrot.slane %v391, 7
      %v404 = vrot.slane %v392, 7
      %v405 = vrot.slane %v393, 7
      %v406 = vrot.slane %v394, 7
      %v411 = vsub.f32 %v395, %v403
      %v412 = vsub.f32 %v396, %v404
      %v413 = vsub.f32 %v397, %v405
      %v414 = vsub.f32 %v398, %v406
      %v419 = vrot.slane %v358, 7
      %v420 = vrot.slane %v359, 7
      %v421 = vrot.slane %v360, 7
      %v422 = vrot.slane %v361, 7
      %v431 = vrot.slane %v411, 7
      %v432 = vrot.slane %v412, 7
      %v433 = vrot.slane %v413, 7
      %v434 = vrot.slane %v414, 7
      %vm439 = vcmask 1040384
      %v440 = vsel %vm439, %v304, %v419
      %v441 = vsel %vm439, %v310, %v420
      %v442 = vsel %vm439, %v316, %v421
      %v443 = vsel %vm439, %v324, %v422
      %vm444 = vcmask 1041408
      %v445 = vsel %vm444, %v440, %v431
      %v446 = vsel %vm444, %v441, %v432
      %v447 = vsel %vm444, %v442, %v433
      %v448 = vsel %vm444, %v443, %v434
      %v453 = vcombine.low %v445, %v446
      %v454 = vcombine.low %v447, %v448
      %457 = vst [vmem:[%s217] sm:$0x77] %v453
      %vm458 = vcmask 1042432
      %vm459 = vcmask 538628
      %vm460 = vmor %vm459, %vm458
      %461 = vst.msk [vmem:[%s217 + $0x8] sm:$0x77] %vm460, %v454
      %s462 = smul.u32 4, %s18
      %p463 = scmp.lt.s32.totalorder %s17, 1
      %s464 = scalar_select %p463, %s17, 1
      %p465 = scmp.lt.s32.totalorder %s462, 3
      %s466 = scalar_select %p465, %s462, 3
      %s467 = smul.addr %s464, 4
      %s468 = sadd.s32 %s466, %s467
      %s469 = smul.addr %s468, 4
      %s470 = scalar_lea.vmem %s2, %s469
      // Predicated region
      $region29: #{face_loss.3} parent=27 // pred_check
        %p471 = pneg %p101
      $region30: #{face_loss.3} parent=27 // pred_check_branch
        %473 = sbr.rel (%p471) target = $region32
      $region31: #{face_loss.3} parent=27 // pred_region
        %s474 = smul.u32 4, %s18
      $region32: #{face_loss.3} parent=27 // pred_fallthru
        _
    $region28: #{face_loss.3} parent=5 // pred_fallthru
      _
    %p475 = scmp.le.s32.totalorder 2, %s8
    // Predicated region
    $region33: #{face_loss.3} parent=5 // pred_check
      %p476 = pneg %p475
    $region34: #{face_loss.3} parent=5 // pred_check_branch
      %478 = sbr.rel (%p476) target = $region36
    $region35: #{face_loss.3} parent=5 // pred_region
      %s479 = ssub.s32 %s8, 2
      // Predicated region
      $region37: #{face_loss.3} parent=35 // pred_check
        %p480 = pneg %p107
      $region38: #{face_loss.3} parent=35 // pred_check_branch
        %482 = sbr.rel (%p480) target = $region40
      $region39: #{face_loss.3} parent=35 // pred_region
        %s483 = smul.u32 4, %s20
        %p484 = scmp.lt.s32.totalorder %s19, 1
        %s485 = scalar_select %p484, %s19, 1
        %p486 = scmp.lt.s32.totalorder %s483, 3
        %s487 = scalar_select %p486, %s483, 3
        %s488 = smul.addr %s485, 4
        %s489 = sadd.s32 %s487, %s488
        %s490 = smul.addr %s489, 4
        %s491 = scalar_lea.vmem %s2, %s490
      $region40: #{face_loss.3} parent=35 // pred_fallthru
        _
    $region36: #{face_loss.3} parent=5 // pred_fallthru
      _
  $region6: #{face_loss.3} parent=0 // loop_footer
    %s12 = sadd.s32 1, %s8
  $region7: #{face_loss.3} parent=0 // loop_footer_branch
    %7 = sbr.rel target = $region3
  $region8: #{face_loss.3} parent=0 // loop_exit
    _

</llo_original>
